<compile_context>
chip_gen: v7x
topology: tpu7x:2x2x1
jax: 0.10.0
libtpu: 0.0.40
codegen_flags: <defaults>
</compile_context>

<pallas_src>
import functools

import jax
import jax.numpy as jnp
from jax.experimental import pallas as pl
from jax.experimental.pallas import tpu as pltpu


# ---------------------------------------------------------------------------
# Helpers
# ---------------------------------------------------------------------------
def cv_squared(x):
    """torch-equivalent cv_squared: unbiased var / (mean^2 + eps)."""
    x = x.astype(jnp.float32)
    n = x.shape[0]
    if n == 1:
        return jnp.zeros((), jnp.float32)
    mean = jnp.mean(x)
    var = jnp.sum((x - mean) ** 2) / (n - 1)
    return var / (mean ** 2 + 1e-10)


# ---------------------------------------------------------------------------
# Forward
# ---------------------------------------------------------------------------
@functools.partial(jax.jit, static_argnames=("k", "loss_coef", "compute_dtype"))
def sparse_rmok_forward(var_x, w_gate, expert_w, expert_b, *, k=3,
                        loss_coef=0.01, compute_dtype=jnp.float32):
    B, L, N = var_x.shape
    E, S, _ = expert_w.shape
    D = L * N

    var_x = var_x.astype(jnp.float32)
    x_flat = var_x.reshape(B, D)                      # free reshape (contiguous)

    # --- noisy_top_k_gating, eval path (XLA fuses this tiny chain) ----------
    # NOTE: jax.lax.top_k tie-breaking can differ from torch.topk on exact
    # ties (e.g. the zero-initialized w_gate regime).
    logits = x_flat @ w_gate.astype(jnp.float32)
    probs = jax.nn.softmax(logits, axis=-1)
    kk = min(k + 1, E)
    top_vals, top_idx = jax.lax.top_k(probs, kk)
    top_k_vals = top_vals[:, :k]
    top_k_idx = top_idx[:, :k]
    top_k_gates = top_k_vals / (jnp.sum(top_k_vals, axis=1, keepdims=True) + 1e-6)
    rows = jnp.arange(B)[:, None]
    gates = jnp.zeros((B, E), jnp.float32).at[rows, top_k_idx].set(top_k_gates)

    load = jnp.sum((gates > 0).astype(jnp.float32), axis=0)       # (E,)
    importance = jnp.sum(gates, axis=0)                           # (E,)
    loss = loss_coef * (cv_squared(importance) + cv_squared(load))

    # --- layout plumbing: put batch*n_vars on lanes --------------------------
    BN = B * N
    x_t = jnp.transpose(var_x, (1, 0, 2)).reshape(L, BN)          # (L, B*N)
    g_bcast = jnp.repeat(gates.T, N, axis=1)                      # (E, B*N)
    w_f = expert_w.astype(jnp.float32)                            # (E, S, L)
    b_mat = expert_b.reshape(E, S).T.astype(jnp.float32)          # (S, E)

    # lane tile over B*N: single block when small, else 2048-lane tiles with
    # zero padding for the ragged tail (lane-local math => padding is safe).
    MAX_TBN = 2048
    if BN <= MAX_TBN:
        TBN, BN_pad = BN, BN
    else:
        TBN = MAX_TBN
        BN_pad = ((BN + TBN - 1) // TBN) * TBN
        if BN_pad != BN:
            x_t = jnp.pad(x_t, ((0, 0), (0, BN_pad - BN)))
            g_bcast = jnp.pad(g_bcast, ((0, 0), (0, BN_pad - BN)))
    nt = BN_pad // TBN

    # --- fused expert compute + gate-weighted combine (single Pallas call) ---
    def combine_kernel(x_ref, g_ref, w_ref, b_ref, o_ref):
        # x_ref: (L, TBN)   g_ref: (E, TBN)   w_ref: (E, S, L)   b_ref: (S, E)
        # o_ref: (S, TBN)
        x = x_ref[...].astype(compute_dtype)
        g = g_ref[...]                                            # f32 gates
        # gate-weighted bias: (S, E) @ (E, TBN) -> (S, TBN)
        acc = jnp.dot(b_ref[...], g, preferred_element_type=jnp.float32)
        for e in range(E):                                        # static unroll
            eo = jnp.dot(w_ref[e].astype(compute_dtype), x,
                         preferred_element_type=jnp.float32)      # (S, TBN)
            acc = acc + g[e:e + 1, :] * eo                        # lane-dense FMA
        o_ref[...] = acc.astype(o_ref.dtype)

    out_flat = pl.pallas_call(
        combine_kernel,
        out_shape=jax.ShapeDtypeStruct((S, BN_pad), jnp.float32),
        grid=(nt,),
        in_specs=[
            pl.BlockSpec((L, TBN), lambda t: (0, t)),             # x (lane tile)
            pl.BlockSpec((E, TBN), lambda t: (0, t)),             # gate broadcast
            pl.BlockSpec((E, S, L), lambda t: (0, 0, 0)),         # expert weights
            pl.BlockSpec((S, E), lambda t: (0, 0)),               # expert biases
        ],
        out_specs=pl.BlockSpec((S, TBN), lambda t: (0, t)),
        compiler_params=pltpu.CompilerParams(
            dimension_semantics=("parallel",),
            vmem_limit_bytes=64 * 1024 * 1024),
    )(x_t, g_bcast, w_f, b_mat)

    # (S, B*N) -> (B, S, Y); tiny wrapper-side transpose.
    prediction = out_flat[:, :BN].reshape(S, B, N).transpose(1, 0, 2)
    return prediction, loss, gates


# ---------------------------------------------------------------------------
# Pure-JAX reference (dense gate-weighted combine, PyTorch eval semantics)
# ---------------------------------------------------------------------------
def reference_forward(var_x, expert_w, expert_b, gates):
    eo = jnp.einsum("bln,esl->ebsn", var_x, expert_w)
    eo = eo + expert_b[:, 0, :][:, None, :, None]
    return jnp.einsum("be,ebsn->bsn", gates, eo)


if __name__ == "__main__":
    # Small shapes consistent with the module:
    #   inputs = (L, N) = (16, 8), outputs = (S, Y) = (12, 8), 6 experts, k = 3
    L, N = 16, 8
    S, Y = 12, 8
    E, K = 6, 3
    D = L * N

    key = jax.random.PRNGKey(0)
    k_x, k_wg, k_ew, k_eb, k_x2 = jax.random.split(key, 5)

    # torch init is zeros for w_gate; small random values make top-k non-trivial.
    w_gate = 0.1 * jax.random.normal(k_wg, (D, E), dtype=jnp.float32)
    expert_w = 0.1 * jax.random.normal(k_ew, (E, S, L), dtype=jnp.float32)
    expert_b = 0.01 * jax.random.normal(k_eb, (E, 1, S), dtype=jnp.float32)

    # --- small batch (single lane block) ------------------------------------
    B = 8
    var_x = jax.random.normal(k_x, (B, L, N), dtype=jnp.float32)
    prediction, loss, gates = sparse_rmok_forward(
        var_x, w_gate, expert_w, expert_b, k=K, loss_coef=0.01)
    prediction = jax.block_until_ready(prediction)
    loss = jax.block_until_ready(loss)

    pred_ref = reference_forward(var_x, expert_w, expert_b, gates)
    assert prediction.shape == (B, S, Y), prediction.shape
    assert bool(jnp.isfinite(loss))
    err = float(jnp.max(jnp.abs(prediction - pred_ref)))
    assert err < 1e-4, f"max abs err {err}"

    # --- larger batch (multi-tile grid + ragged-tail padding path) ----------
    B2 = 300                                 # B2*N = 2400 > 2048 -> 2 lane tiles
    var_x2 = jax.random.normal(k_x2, (B2, L, N), dtype=jnp.float32)
    pred2, loss2, gates2 = sparse_rmok_forward(
        var_x2, w_gate, expert_w, expert_b, k=K, loss_coef=0.01)
    pred2 = jax.block_until_ready(pred2)
    pred2_ref = reference_forward(var_x2, expert_w, expert_b, gates2)
    assert pred2.shape == (B2, S, Y), pred2.shape
    assert bool(jnp.isfinite(loss2))
    err2 = float(jnp.max(jnp.abs(pred2 - pred2_ref)))
    assert err2 < 1e-4, f"max abs err (large batch) {err2}"

    # TODO(synk): training-time noisy gating (randn noise, _prob_in_top_k load),
    # dropout / RevIN, and python-side gates_log bookkeeping are training/host
    # only and omitted from the eval-path kernel.
    print("KERNEL_OK")
</pallas_src>

<mosaic_0001>
module attributes {stable_mosaic.version = 11 : i64} {
  func.func @combine_kernel(%arg0: i32, %arg1: memref<16x64xf32, #tpu.memory_space<vmem>>, %arg2: memref<6x64xf32, #tpu.memory_space<vmem>>, %arg3: memref<6x12x16xf32, #tpu.memory_space<vmem>>, %arg4: memref<12x6xf32, #tpu.memory_space<vmem>>, %arg5: memref<12x64xf32, #tpu.memory_space<vmem>>) attributes {dimension_semantics = [#tpu.dimension_semantics<parallel>], iteration_bounds = array<i64: 1>, scalar_prefetch = 0 : i64, scratch_operands = 0 : i64, tpu.core_type = #tpu.core_type<tc>, window_params = [{transform_indices = @transform_0, window_bounds = array<i64: 16, 64>}, {transform_indices = @transform_1, window_bounds = array<i64: 6, 64>}, {pipeline_mode = #tpu.pipeline_mode<synchronous>, transform_indices = @transform_2, window_bounds = array<i64: 6, 12, 16>}, {pipeline_mode = #tpu.pipeline_mode<synchronous>, transform_indices = @transform_3, window_bounds = array<i64: 12, 6>}, {transform_indices = @transform_4, window_bounds = array<i64: 12, 64>}]} {
    %c0 = arith.constant 0 : index
    %c0_0 = arith.constant 0 : index
    %0 = vector.load %arg1[%c0, %c0_0] : memref<16x64xf32, #tpu.memory_space<vmem>>, vector<16x64xf32>
    %c0_1 = arith.constant 0 : index
    %c0_2 = arith.constant 0 : index
    %1 = vector.load %arg2[%c0_1, %c0_2] : memref<6x64xf32, #tpu.memory_space<vmem>>, vector<6x64xf32>
    %c0_3 = arith.constant 0 : index
    %c0_4 = arith.constant 0 : index
    %2 = vector.load %arg4[%c0_3, %c0_4] : memref<12x6xf32, #tpu.memory_space<vmem>>, vector<12x6xf32>
    %cst = arith.constant dense<0.000000e+00> : vector<12x64xf32>
    %3 = tpu.matmul %2, %1, %cst {dimension_numbers = #tpu.dot_dimension_numbers<[1], [0], [0], [1], [0, 0, 1, 1], [], []>} : vector<12x6xf32>, vector<6x64xf32>, vector<12x64xf32> -> vector<12x64xf32>
    %c0_5 = arith.constant 0 : index
    %c0_6 = arith.constant 0 : index
    %c0_7 = arith.constant 0 : index
    %4 = vector.load %arg3[%c0_5, %c0_6, %c0_7] : memref<6x12x16xf32, #tpu.memory_space<vmem>>, vector<1x12x16xf32>
    %5 = vector.shape_cast %4 : vector<1x12x16xf32> to vector<12x16xf32>
    %cst_8 = arith.constant dense<0.000000e+00> : vector<12x64xf32>
    %6 = tpu.matmul %5, %0, %cst_8 {dimension_numbers = #tpu.dot_dimension_numbers<[1], [0], [0], [1], [0, 0, 1, 1], [], []>} : vector<12x16xf32>, vector<16x64xf32>, vector<12x64xf32> -> vector<12x64xf32>
    %7 = vector.extract_strided_slice %1 {offsets = [0, 0], sizes = [1, 64], strides = [1, 1]} : vector<6x64xf32> to vector<1x64xf32>
    %8 = vector.broadcast %7 : vector<1x64xf32> to vector<12x64xf32>
    %9 = arith.mulf %8, %6 : vector<12x64xf32>
    %10 = arith.addf %3, %9 : vector<12x64xf32>
    %c1 = arith.constant 1 : index
    %c0_9 = arith.constant 0 : index
    %c0_10 = arith.constant 0 : index
    %11 = vector.load %arg3[%c1, %c0_9, %c0_10] : memref<6x12x16xf32, #tpu.memory_space<vmem>>, vector<1x12x16xf32>
    %12 = vector.shape_cast %11 : vector<1x12x16xf32> to vector<12x16xf32>
    %cst_11 = arith.constant dense<0.000000e+00> : vector<12x64xf32>
    %13 = tpu.matmul %12, %0, %cst_11 {dimension_numbers = #tpu.dot_dimension_numbers<[1], [0], [0], [1], [0, 0, 1, 1], [], []>} : vector<12x16xf32>, vector<16x64xf32>, vector<12x64xf32> -> vector<12x64xf32>
    %14 = vector.extract_strided_slice %1 {offsets = [1, 0], sizes = [1, 64], strides = [1, 1]} : vector<6x64xf32> to vector<1x64xf32>
    %15 = vector.broadcast %14 : vector<1x64xf32> to vector<12x64xf32>
    %16 = arith.mulf %15, %13 : vector<12x64xf32>
    %17 = arith.addf %10, %16 : vector<12x64xf32>
    %c2 = arith.constant 2 : index
    %c0_12 = arith.constant 0 : index
    %c0_13 = arith.constant 0 : index
    %18 = vector.load %arg3[%c2, %c0_12, %c0_13] : memref<6x12x16xf32, #tpu.memory_space<vmem>>, vector<1x12x16xf32>
    %19 = vector.shape_cast %18 : vector<1x12x16xf32> to vector<12x16xf32>
    %cst_14 = arith.constant dense<0.000000e+00> : vector<12x64xf32>
    %20 = tpu.matmul %19, %0, %cst_14 {dimension_numbers = #tpu.dot_dimension_numbers<[1], [0], [0], [1], [0, 0, 1, 1], [], []>} : vector<12x16xf32>, vector<16x64xf32>, vector<12x64xf32> -> vector<12x64xf32>
    %21 = vector.extract_strided_slice %1 {offsets = [2, 0], sizes = [1, 64], strides = [1, 1]} : vector<6x64xf32> to vector<1x64xf32>
    %22 = vector.broadcast %21 : vector<1x64xf32> to vector<12x64xf32>
    %23 = arith.mulf %22, %20 : vector<12x64xf32>
    %24 = arith.addf %17, %23 : vector<12x64xf32>
    %c3 = arith.constant 3 : index
    %c0_15 = arith.constant 0 : index
    %c0_16 = arith.constant 0 : index
    %25 = vector.load %arg3[%c3, %c0_15, %c0_16] : memref<6x12x16xf32, #tpu.memory_space<vmem>>, vector<1x12x16xf32>
    %26 = vector.shape_cast %25 : vector<1x12x16xf32> to vector<12x16xf32>
    %cst_17 = arith.constant dense<0.000000e+00> : vector<12x64xf32>
    %27 = tpu.matmul %26, %0, %cst_17 {dimension_numbers = #tpu.dot_dimension_numbers<[1], [0], [0], [1], [0, 0, 1, 1], [], []>} : vector<12x16xf32>, vector<16x64xf32>, vector<12x64xf32> -> vector<12x64xf32>
    %28 = vector.extract_strided_slice %1 {offsets = [3, 0], sizes = [1, 64], strides = [1, 1]} : vector<6x64xf32> to vector<1x64xf32>
    %29 = vector.broadcast %28 : vector<1x64xf32> to vector<12x64xf32>
    %30 = arith.mulf %29, %27 : vector<12x64xf32>
    %31 = arith.addf %24, %30 : vector<12x64xf32>
    %c4 = arith.constant 4 : index
    %c0_18 = arith.constant 0 : index
    %c0_19 = arith.constant 0 : index
    %32 = vector.load %arg3[%c4, %c0_18, %c0_19] : memref<6x12x16xf32, #tpu.memory_space<vmem>>, vector<1x12x16xf32>
    %33 = vector.shape_cast %32 : vector<1x12x16xf32> to vector<12x16xf32>
    %cst_20 = arith.constant dense<0.000000e+00> : vector<12x64xf32>
    %34 = tpu.matmul %33, %0, %cst_20 {dimension_numbers = #tpu.dot_dimension_numbers<[1], [0], [0], [1], [0, 0, 1, 1], [], []>} : vector<12x16xf32>, vector<16x64xf32>, vector<12x64xf32> -> vector<12x64xf32>
    %35 = vector.extract_strided_slice %1 {offsets = [4, 0], sizes = [1, 64], strides = [1, 1]} : vector<6x64xf32> to vector<1x64xf32>
    %36 = vector.broadcast %35 : vector<1x64xf32> to vector<12x64xf32>
    %37 = arith.mulf %36, %34 : vector<12x64xf32>
    %38 = arith.addf %31, %37 : vector<12x64xf32>
    %c5 = arith.constant 5 : index
    %c0_21 = arith.constant 0 : index
    %c0_22 = arith.constant 0 : index
    %39 = vector.load %arg3[%c5, %c0_21, %c0_22] : memref<6x12x16xf32, #tpu.memory_space<vmem>>, vector<1x12x16xf32>
    %40 = vector.shape_cast %39 : vector<1x12x16xf32> to vector<12x16xf32>
    %cst_23 = arith.constant dense<0.000000e+00> : vector<12x64xf32>
    %41 = tpu.matmul %40, %0, %cst_23 {dimension_numbers = #tpu.dot_dimension_numbers<[1], [0], [0], [1], [0, 0, 1, 1], [], []>} : vector<12x16xf32>, vector<16x64xf32>, vector<12x64xf32> -> vector<12x64xf32>
    %42 = vector.extract_strided_slice %1 {offsets = [5, 0], sizes = [1, 64], strides = [1, 1]} : vector<6x64xf32> to vector<1x64xf32>
    %43 = vector.broadcast %42 : vector<1x64xf32> to vector<12x64xf32>
    %44 = arith.mulf %43, %41 : vector<12x64xf32>
    %45 = arith.addf %38, %44 : vector<12x64xf32>
    %c0_24 = arith.constant 0 : index
    %c0_25 = arith.constant 0 : index
    %46 = vector.load %arg5[%c0_24, %c0_25] : memref<12x64xf32, #tpu.memory_space<vmem>>, vector<12x64xf32>
    tpu.vector_store %arg5[%c0_24, %c0_25], %45 {strides = array<i32>} : memref<12x64xf32, #tpu.memory_space<vmem>>, vector<12x64xf32>,
    return
  }
  func.func @transform_0(%arg0: i32) -> (i32, i32) {
    %c0_i32 = arith.constant 0 : i32
    %c0_i32_0 = arith.constant 0 : i32
    return %c0_i32, %arg0 : i32, i32
  }
  func.func @transform_1(%arg0: i32) -> (i32, i32) {
    %c0_i32 = arith.constant 0 : i32
    %c0_i32_0 = arith.constant 0 : i32
    return %c0_i32, %arg0 : i32, i32
  }
  func.func @transform_2(%arg0: i32) -> (i32, i32, i32) {
    %c0_i32 = arith.constant 0 : i32
    %c0_i32_0 = arith.constant 0 : i32
    %c0_i32_1 = arith.constant 0 : i32
    %c0_i32_2 = arith.constant 0 : i32
    return %c0_i32, %c0_i32_0, %c0_i32_1 : i32, i32, i32
  }
  func.func @transform_3(%arg0: i32) -> (i32, i32) {
    %c0_i32 = arith.constant 0 : i32
    %c0_i32_0 = arith.constant 0 : i32
    %c0_i32_1 = arith.constant 0 : i32
    return %c0_i32, %c0_i32_0 : i32, i32
  }
  func.func @transform_4(%arg0: i32) -> (i32, i32) {
    %c0_i32 = arith.constant 0 : i32
    %c0_i32_0 = arith.constant 0 : i32
    return %c0_i32, %arg0 : i32, i32
  }
}

</mosaic_0001>

<llo_original>
// kernel: sparse_rmok_forward.1
$region0: #{sparse_rmok_forward.1}
  #allocation0 [shape = 'u32[]', space=smem, size = 0x4, offset = 0x4, fixed_abs, tag = 'smem constant byte address 0x4 - core index']
  #allocation1 [shape = 'u32[144,128]{1,0:T(1,128)}', space=vmem, size = 0x12000, scoped, tag = 'internal scratch']
  %s0 = inlined_call_operand.hbm [shape: f32[16,64], index: 0, kind: input, shape index: {}]
  %s1 = inlined_call_operand.hbm [shape: f32[6,64], index: 1, kind: input, shape index: {}]
  %s2 = inlined_call_operand.hbm [shape: f32[6,12,16], index: 2, kind: input, shape index: {}]
  %s3 = inlined_call_operand.hbm [shape: f32[12,6], index: 3, kind: input, shape index: {}]
  %s4 = inlined_call_operand.hbm [shape: f32[12,64], index: 4, kind: output, shape index: {}]
  %s5 = sld [smem:[#allocation0]]
  $region42: #{sparse_rmok_forward.1} parent=0
    _
  %s7 = ssub.s32 1, %s5
  %s8 = scalar_select 0, %s7, %s5
  $region1: #{sparse_rmok_forward.1} parent=0
    #allocation2 [shape = 'u8[8192]{0}', space=vmem, size = 0x2000, scoped, tag = 'input window, operand 0, single buffered']
    #allocation3 [shape = 's32[1]{0}', space=sflag, size = 0x4, scoped, tag = 'scoped memory for sparse_rmok_forward.1']
    #allocation4 [shape = 's32[1]{0}', space=sflag, size = 0x4, scoped, tag = 'scoped memory for sparse_rmok_forward.1']
    #allocation5 [shape = 'u8[4096]{0}', space=vmem, size = 0x1000, scoped, tag = 'input window, operand 1, single buffered']
    #allocation6 [shape = 's32[1]{0}', space=sflag, size = 0x4, scoped, tag = 'scoped memory for sparse_rmok_forward.1']
    #allocation7 [shape = 'u8[49152]{0}', space=vmem, size = 0xc000, scoped, tag = 'input window, operand 2, single buffered']
    #allocation8 [shape = 'u8[8192]{0}', space=vmem, size = 0x2000, scoped, tag = 'input window, operand 3, single buffered']
    #allocation9 [shape = 's32[1]{0}', space=sflag, size = 0x4, scoped, tag = 'scoped memory for sparse_rmok_forward.1']
    #allocation10 [shape = 'u8[8192]{0}', space=vmem, size = 0x2000, scoped, tag = 'output window, operand 0, single buffered']
    %9 = vsyncpa [#allocation3], 0
    %10 = vsyncpa [#allocation6], 0
    %11 = vsyncpa [#allocation9], 0
    %12 = vsyncpa [#allocation4], 0
    // Predicated region
    $region2: #{sparse_rmok_forward.1} parent=1 // pred_check
      _
    $region3: #{sparse_rmok_forward.1} parent=1 // pred_check_branch
      %14 = sbr.rel (0) target = $region5
    $region4: #{sparse_rmok_forward.1} parent=1 // pred_region
      %s16 = ssub.s32 256, 256
      %17 = vsyncadd [#allocation3], %s16
      %s18 = sshll.u32 [#allocation2], 4
      %s19 = int_to_ptr.vmem [resolvable:$true] %s18
      %24 = dma.hbm_to_vmem [thread:$0]  %s0, 256, %s19, [#allocation3], 128, 128, 8
    $region5: #{sparse_rmok_forward.1} parent=1 // pred_fallthru
      _
    // Predicated region
    $region6: #{sparse_rmok_forward.1} parent=1 // pred_check
      _
    $region7: #{sparse_rmok_forward.1} parent=1 // pred_check_branch
      %26 = sbr.rel (0) target = $region9
    $region8: #{sparse_rmok_forward.1} parent=1 // pred_region
      %s28 = ssub.s32 128, 128
      %29 = vsyncadd [#allocation6], %s28
      %s31 = sshll.u32 [#allocation5], 4
      %s32 = int_to_ptr.vmem [resolvable:$true] %s31
      %34 = dma.hbm_to_vmem [thread:$0]  %s1, 128, %s32, [#allocation6]
    $region9: #{sparse_rmok_forward.1} parent=1 // pred_fallthru
      _
    // Predicated region
    $region10: #{sparse_rmok_forward.1} parent=1 // pred_check
      _
    $region11: #{sparse_rmok_forward.1} parent=1 // pred_check_branch
      %36 = sbr.rel (0) target = $region13
    $region12: #{sparse_rmok_forward.1} parent=1 // pred_region
      %s38 = ssub.s32 1536, 1536
      %39 = vsyncadd [#allocation6], %s38
      %s40 = sshll.u32 [#allocation7], 4
      %s41 = int_to_ptr.vmem [resolvable:$true] %s40
      %46 = dma.hbm_to_vmem [thread:$0]  %s2, 1536, %s41, [#allocation6], 128, 128, 8
    $region13: #{sparse_rmok_forward.1} parent=1 // pred_fallthru
      _
    // Predicated region
    $region14: #{sparse_rmok_forward.1} parent=1 // pred_check
      _
    $region15: #{sparse_rmok_forward.1} parent=1 // pred_check_branch
      %48 = sbr.rel (0) target = $region17
    $region16: #{sparse_rmok_forward.1} parent=1 // pred_region
      %s50 = ssub.s32 256, 256
      %51 = vsyncadd [#allocation9], %s50
      %s52 = sshll.u32 [#allocation8], 4
      %s53 = int_to_ptr.vmem [resolvable:$true] %s52
      %58 = dma.hbm_to_vmem [thread:$0]  %s3, 256, %s53, [#allocation9], 128, 128, 8
    $region17: #{sparse_rmok_forward.1} parent=1 // pred_fallthru
      _
    // Predicated region
    $region18: #{sparse_rmok_forward.1} parent=1 // pred_check
      _
    $region19: #{sparse_rmok_forward.1} parent=1 // pred_check_branch
      %60 = sbr.rel (0) target = $region21
    $region20: #{sparse_rmok_forward.1} parent=1 // pred_region
      %61 = dma.done [#allocation3], 256
    $region21: #{sparse_rmok_forward.1} parent=1 // pred_fallthru
      _
    // Predicated region
    $region22: #{sparse_rmok_forward.1} parent=1 // pred_check
      _
    $region23: #{sparse_rmok_forward.1} parent=1 // pred_check_branch
      %63 = sbr.rel (0) target = $region25
    $region24: #{sparse_rmok_forward.1} parent=1 // pred_region
      %64 = dma.done [#allocation6], 128
    $region25: #{sparse_rmok_forward.1} parent=1 // pred_fallthru
      _
    // Predicated region
    $region26: #{sparse_rmok_forward.1} parent=1 // pred_check
      _
    $region27: #{sparse_rmok_forward.1} parent=1 // pred_check_branch
      %66 = sbr.rel (0) target = $region29
    $region28: #{sparse_rmok_forward.1} parent=1 // pred_region
      %67 = dma.done [#allocation6], 1536
    $region29: #{sparse_rmok_forward.1} parent=1 // pred_fallthru
      _
    // Predicated region
    $region30: #{sparse_rmok_forward.1} parent=1 // pred_check
      _
    $region31: #{sparse_rmok_forward.1} parent=1 // pred_check_branch
      %69 = sbr.rel (0) target = $region33
    $region32: #{sparse_rmok_forward.1} parent=1 // pred_region
      %70 = dma.done [#allocation9], 256
    $region33: #{sparse_rmok_forward.1} parent=1 // pred_fallthru
      _
    %v71 = vld [vmem:[#allocation2] sm:$0xff]
    %v72 = vld [vmem:[#allocation2 + $0x8] sm:$0xff]
    %v73 = vld [vmem:[#allocation5] sm:$0x3f]
    %v74 = vld [vmem:[#allocation8] sm:$0xff]
    %v75 = vld [vmem:[#allocation8 + $0x8] sm:$0xf]
    %v76 = vld [vmem:[#allocation7] sm:$0xff]
    %v77 = vld [vmem:[#allocation7 + $0x8] sm:$0xf]
    %vm78 = vcmask 130048
    %v80 = vsel %vm78, %v76, 0
    %v83 = vsel %vm78, %v77, 0
    %85 = vmatprep.subr.mxu0 0.0
    %86 = vmatpush1.msra.mxu0 %v71
    %87 = vmatprep.subr.mxu0 0.0
    %88 = vmatpush1.msra.mxu0 %v72
    %89 = vmatprep.subr.mxu0 0.0
    %90 = vmatpush1.msra.mxu0 0.0
    %91 = vmatprep.subr.mxu0 0.0
    %92 = vmatpush1.msra.mxu0 0.0
    %93 = vmatprep.subr.mxu0 0.0
    %94 = vmatpush1.msra.mxu0 0.0
    %95 = vmatprep.subr.mxu0 0.0
    %96 = vmatpush1.msra.mxu0 0.0
    %97 = vmatprep.subr.mxu0 0.0
    %98 = vmatpush1.msra.mxu0 0.0
    %99 = vmatprep.subr.mxu0 0.0
    %100 = vmatpush1.msra.mxu0 0.0
    %101 = vmatprep.subr.mxu0 0.0
    %102 = vmatpush1.msra.mxu0 0.0
    %103 = vmatprep.subr.mxu0 0.0
    %104 = vmatpush1.msra.mxu0 0.0
    %105 = vmatprep.subr.mxu0 0.0
    %106 = vmatpush1.msra.mxu0 0.0
    %107 = vmatprep.subr.mxu0 0.0
    %108 = vmatpush1.msra.mxu0 0.0
    %109 = vmatprep.subr.mxu0 0.0
    %110 = vmatpush1.msra.mxu0 0.0
    %111 = vmatprep.subr.mxu0 0.0
    %112 = vmatpush1.msra.mxu0 0.0
    %113 = vmatprep.subr.mxu0 0.0
    %114 = vmatpush1.msra.mxu0 0.0
    %115 = vmatprep.subr.mxu0 0.0
    %116 = vmatpush1.msra.mxu0 0.0
    %117 = vmatprep.subr.mxu0 0.0
    %118 = vmatpush1.msra.mxu0 0.0
    %119 = vmatprep.subr.mxu0 0.0
    %120 = vmatpush1.msra.mxu0 0.0
    %121 = vmatprep.subr.mxu0 0.0
    %122 = vmatpush1.msra.mxu0 0.0
    %123 = vmatprep.subr.mxu0 0.0
    %124 = vmatpush1.msra.mxu0 0.0
    %125 = vmatprep.subr.mxu0 0.0
    %126 = vmatpush1.msra.mxu0 0.0
    %127 = vmatprep.subr.mxu0 0.0
    %128 = vmatpush1.msra.mxu0 0.0
    %129 = vmatprep.subr.mxu0 0.0
    %130 = vmatpush1.msra.mxu0 0.0
    %131 = vmatprep.subr.mxu0 0.0
    %132 = vmatpush1.msra.mxu0 0.0
    %133 = vmatprep.subr.mxu0 0.0
    %134 = vmatpush1.msra.mxu0 0.0
    %135 = vmatprep.subr.mxu0 0.0
    %136 = vmatpush1.msra.mxu0 0.0
    %137 = vmatprep.subr.mxu0 0.0
    %138 = vmatpush1.msra.mxu0 0.0
    %139 = vmatprep.subr.mxu0 0.0
    %140 = vmatpush1.msra.mxu0 0.0
    %141 = vmatprep.subr.mxu0 0.0
    %142 = vmatpush1.msra.mxu0 0.0
    %143 = vmatprep.subr.mxu0 0.0
    %144 = vmatpush1.msra.mxu0 0.0
    %145 = vmatprep.subr.mxu0 0.0
    %146 = vmatpush1.msra.mxu0 0.0
    %147 = vmatprep.subr.mxu0 0.0
    %148 = vmatpush1.msra.mxu0 0.0
    %149 = vmatprep.mubr.f32.mxu0 0.0
    %150 = vmatmul.mubr.f32.gmra.mrb[0].mxu0 %v80
    %v151 = vpop.f32.mrb[0].mxu0
    %v152 = vadd.f32 0.0, %v151
    %v153 = vpop.f32.mrb[0].mxu0
    %154 = vmatprep.mubr.f32.mxu0 0.0
    %155 = vmatmul.mubr.f32.gmra.mrb[0].mxu0 %v83
    %v156 = vpop.f32.mrb[0].mxu0
    %v157 = vadd.f32 0.0, %v156
    %v158 = vpop.f32.mrb[0].mxu0
    %159 = vdwg.mxu0
    %v160 = vlaneseq
    %v161 = vshrl.u32 %v160, 7
    %v162 = vsub.s32 0, %v161
    %v163 = vrot.slane %v73, %v162
    %v164 = vmul.f32 %v163, %v152
    %v165 = vmul.f32 %v163, %v157
    %vm166 = vcmask 48128
    %v168 = vsel %vm166, %v74, 0
    %v171 = vsel %vm166, %v75, 0
    %vm173 = vcmask 1045504
    %v175 = vsel %vm173, %v73, 0
    %177 = vmatprep.subr.mxu0 0.0
    %178 = vmatpush1.msra.mxu0 %v175
    %179 = vmatprep.subr.mxu0 0.0
    %180 = vmatpush1.msra.mxu0 0.0
    %181 = vmatprep.subr.mxu0 0.0
    %182 = vmatpush1.msra.mxu0 0.0
    %183 = vmatprep.subr.mxu0 0.0
    %184 = vmatpush1.msra.mxu0 0.0
    %185 = vmatprep.subr.mxu0 0.0
    %186 = vmatpush1.msra.mxu0 0.0
    %187 = vmatprep.subr.mxu0 0.0
    %188 = vmatpush1.msra.mxu0 0.0
    %189 = vmatprep.subr.mxu0 0.0
    %190 = vmatpush1.msra.mxu0 0.0
    %191 = vmatprep.subr.mxu0 0.0
    %192 = vmatpush1.msra.mxu0 0.0
    %193 = vmatprep.subr.mxu0 0.0
    %194 = vmatpush1.msra.mxu0 0.0
    %195 = vmatprep.subr.mxu0 0.0
    %196 = vmatpush1.msra.mxu0 0.0
    %197 = vmatprep.subr.mxu0 0.0
    %198 = vmatpush1.msra.mxu0 0.0
    %199 = vmatprep.subr.mxu0 0.0
    %200 = vmatpush1.msra.mxu0 0.0
    %201 = vmatprep.subr.mxu0 0.0
    %202 = vmatpush1.msra.mxu0 0.0
    %203 = vmatprep.subr.mxu0 0.0
    %204 = vmatpush1.msra.mxu0 0.0
    %205 = vmatprep.subr.mxu0 0.0
    %206 = vmatpush1.msra.mxu0 0.0
    %207 = vmatprep.subr.mxu0 0.0
    %208 = vmatpush1.msra.mxu0 0.0
    %209 = vmatprep.subr.mxu0 0.0
    %210 = vmatpush1.msra.mxu0 0.0
    %211 = vmatprep.subr.mxu0 0.0
    %212 = vmatpush1.msra.mxu0 0.0
    %213 = vmatprep.subr.mxu0 0.0
    %214 = vmatpush1.msra.mxu0 0.0
    %215 = vmatprep.subr.mxu0 0.0
    %216 = vmatpush1.msra.mxu0 0.0
    %217 = vmatprep.subr.mxu0 0.0
    %218 = vmatpush1.msra.mxu0 0.0
    %219 = vmatprep.subr.mxu0 0.0
    %220 = vmatpush1.msra.mxu0 0.0
    %221 = vmatprep.subr.mxu0 0.0
    %222 = vmatpush1.msra.mxu0 0.0
    %223 = vmatprep.subr.mxu0 0.0
    %224 = vmatpush1.msra.mxu0 0.0
    %225 = vmatprep.subr.mxu0 0.0
    %226 = vmatpush1.msra.mxu0 0.0
    %227 = vmatprep.subr.mxu0 0.0
    %228 = vmatpush1.msra.mxu0 0.0
    %229 = vmatprep.subr.mxu0 0.0
    %230 = vmatpush1.msra.mxu0 0.0
    %231 = vmatprep.subr.mxu0 0.0
    %232 = vmatpush1.msra.mxu0 0.0
    %233 = vmatprep.subr.mxu0 0.0
    %234 = vmatpush1.msra.mxu0 0.0
    %235 = vmatprep.subr.mxu0 0.0
    %236 = vmatpush1.msra.mxu0 0.0
    %237 = vmatprep.subr.mxu0 0.0
    %238 = vmatpush1.msra.mxu0 0.0
    %239 = vmatprep.subr.mxu0 0.0
    %240 = vmatpush1.msra.mxu0 0.0
    %241 = vmatprep.mubr.f32.mxu0 0.0
    %242 = vmatmul.mubr.f32.gmra.mrb[0].mxu0 %v168
    %v243 = vpop.f32.mrb[0].mxu0
    %v244 = vadd.f32 %v164, %v243
    %v245 = vpop.f32.mrb[0].mxu0
    %246 = vmatprep.mubr.f32.mxu0 0.0
    %247 = vmatmul.mubr.f32.gmra.mrb[0].mxu0 %v171
    %v248 = vpop.f32.mrb[0].mxu0
    %v249 = vadd.f32 %v165, %v248
    %v250 = vpop.f32.mrb[0].mxu0
    %251 = vdwg.mxu0
    %s252 = scalar_lea.vmem [#allocation7], 16
    %v253 = vld [vmem:[%s252] sm:$0xff]
    %v254 = vld [vmem:[%s252 + $0x8] sm:$0xf]
    %v256 = vsel %vm78, %v253, 0
    %v259 = vsel %vm78, %v254, 0
    %261 = vmatprep.subr.mxu0 0.0
    %262 = vmatpush1.msra.mxu0 %v71
    %263 = vmatprep.subr.mxu0 0.0
    %264 = vmatpush1.msra.mxu0 %v72
    %265 = vmatprep.subr.mxu0 0.0
    %266 = vmatpush1.msra.mxu0 0.0
    %267 = vmatprep.subr.mxu0 0.0
    %268 = vmatpush1.msra.mxu0 0.0
    %269 = vmatprep.subr.mxu0 0.0
    %270 = vmatpush1.msra.mxu0 0.0
    %271 = vmatprep.subr.mxu0 0.0
    %272 = vmatpush1.msra.mxu0 0.0
    %273 = vmatprep.subr.mxu0 0.0
    %274 = vmatpush1.msra.mxu0 0.0
    %275 = vmatprep.subr.mxu0 0.0
    %276 = vmatpush1.msra.mxu0 0.0
    %277 = vmatprep.subr.mxu0 0.0
    %278 = vmatpush1.msra.mxu0 0.0
    %279 = vmatprep.subr.mxu0 0.0
    %280 = vmatpush1.msra.mxu0 0.0
    %281 = vmatprep.subr.mxu0 0.0
    %282 = vmatpush1.msra.mxu0 0.0
    %283 = vmatprep.subr.mxu0 0.0
    %284 = vmatpush1.msra.mxu0 0.0
    %285 = vmatprep.subr.mxu0 0.0
    %286 = vmatpush1.msra.mxu0 0.0
    %287 = vmatprep.subr.mxu0 0.0
    %288 = vmatpush1.msra.mxu0 0.0
    %289 = vmatprep.subr.mxu0 0.0
    %290 = vmatpush1.msra.mxu0 0.0
    %291 = vmatprep.subr.mxu0 0.0
    %292 = vmatpush1.msra.mxu0 0.0
    %293 = vmatprep.subr.mxu0 0.0
    %294 = vmatpush1.msra.mxu0 0.0
    %295 = vmatprep.subr.mxu0 0.0
    %296 = vmatpush1.msra.mxu0 0.0
    %297 = vmatprep.subr.mxu0 0.0
    %298 = vmatpush1.msra.mxu0 0.0
    %299 = vmatprep.subr.mxu0 0.0
    %300 = vmatpush1.msra.mxu0 0.0
    %301 = vmatprep.subr.mxu0 0.0
    %302 = vmatpush1.msra.mxu0 0.0
    %303 = vmatprep.subr.mxu0 0.0
    %304 = vmatpush1.msra.mxu0 0.0
    %305 = vmatprep.subr.mxu0 0.0
    %306 = vmatpush1.msra.mxu0 0.0
    %307 = vmatprep.subr.mxu0 0.0
    %308 = vmatpush1.msra.mxu0 0.0
    %309 = vmatprep.subr.mxu0 0.0
    %310 = vmatpush1.msra.mxu0 0.0
    %311 = vmatprep.subr.mxu0 0.0
    %312 = vmatpush1.msra.mxu0 0.0
    %313 = vmatprep.subr.mxu0 0.0
    %314 = vmatpush1.msra.mxu0 0.0
    %315 = vmatprep.subr.mxu0 0.0
    %316 = vmatpush1.msra.mxu0 0.0
    %317 = vmatprep.subr.mxu0 0.0
    %318 = vmatpush1.msra.mxu0 0.0
    %319 = vmatprep.subr.mxu0 0.0
    %320 = vmatpush1.msra.mxu0 0.0
    %321 = vmatprep.subr.mxu0 0.0
    %322 = vmatpush1.msra.mxu0 0.0
    %323 = vmatprep.subr.mxu0 0.0
    %324 = vmatpush1.msra.mxu0 0.0
    %325 = vmatprep.mubr.f32.mxu0 0.0
    %326 = vmatmul.mubr.f32.gmra.mrb[0].mxu0 %v256
    %v327 = vpop.f32.mrb[0].mxu0
    %v328 = vadd.f32 0.0, %v327
    %v329 = vpop.f32.mrb[0].mxu0
    %330 = vmatprep.mubr.f32.mxu0 0.0
    %331 = vmatmul.mubr.f32.gmra.mrb[0].mxu0 %v259
    %v332 = vpop.f32.mrb[0].mxu0
    %v333 = vadd.f32 0.0, %v332
    %v334 = vpop.f32.mrb[0].mxu0
    %335 = vdwg.mxu0
    %v336 = vlaneseq
    %v337 = vshrl.u32 %v336, 7
    %v338 = vsub.s32 1, %v337
    %v339 = vrot.slane %v73, %v338
    %v340 = vmul.f32 %v339, %v328
    %v341 = vmul.f32 %v339, %v333
    %v342 = vadd.f32 %v244, %v340
    %v343 = vadd.f32 %v249, %v341
    %s344 = scalar_lea.vmem [#allocation7], 32
    %v345 = vld [vmem:[%s344] sm:$0xff]
    %v346 = vld [vmem:[%s344 + $0x8] sm:$0xf]
    %v348 = vsel %vm78, %v345, 0
    %v351 = vsel %vm78, %v346, 0
    %353 = vmatprep.subr.mxu0 0.0
    %354 = vmatpush1.msra.mxu0 %v71
    %355 = vmatprep.subr.mxu0 0.0
    %356 = vmatpush1.msra.mxu0 %v72
    %357 = vmatprep.subr.mxu0 0.0
    %358 = vmatpush1.msra.mxu0 0.0
    %359 = vmatprep.subr.mxu0 0.0
    %360 = vmatpush1.msra.mxu0 0.0
    %361 = vmatprep.subr.mxu0 0.0
    %362 = vmatpush1.msra.mxu0 0.0
    %363 = vmatprep.subr.mxu0 0.0
    %364 = vmatpush1.msra.mxu0 0.0
    %365 = vmatprep.subr.mxu0 0.0
    %366 = vmatpush1.msra.mxu0 0.0
    %367 = vmatprep.subr.mxu0 0.0
    %368 = vmatpush1.msra.mxu0 0.0
    %369 = vmatprep.subr.mxu0 0.0
    %370 = vmatpush1.msra.mxu0 0.0
    %371 = vmatprep.subr.mxu0 0.0
    %372 = vmatpush1.msra.mxu0 0.0
    %373 = vmatprep.subr.mxu0 0.0
    %374 = vmatpush1.msra.mxu0 0.0
    %375 = vmatprep.subr.mxu0 0.0
    %376 = vmatpush1.msra.mxu0 0.0
    %377 = vmatprep.subr.mxu0 0.0
    %378 = vmatpush1.msra.mxu0 0.0
    %379 = vmatprep.subr.mxu0 0.0
    %380 = vmatpush1.msra.mxu0 0.0
    %381 = vmatprep.subr.mxu0 0.0
    %382 = vmatpush1.msra.mxu0 0.0
    %383 = vmatprep.subr.mxu0 0.0
    %384 = vmatpush1.msra.mxu0 0.0
    %385 = vmatprep.subr.mxu0 0.0
    %386 = vmatpush1.msra.mxu0 0.0
    %387 = vmatprep.subr.mxu0 0.0
    %388 = vmatpush1.msra.mxu0 0.0
    %389 = vmatprep.subr.mxu0 0.0
    %390 = vmatpush1.msra.mxu0 0.0
    %391 = vmatprep.subr.mxu0 0.0
    %392 = vmatpush1.msra.mxu0 0.0
    %393 = vmatprep.subr.mxu0 0.0
    %394 = vmatpush1.msra.mxu0 0.0
    %395 = vmatprep.subr.mxu0 0.0
    %396 = vmatpush1.msra.mxu0 0.0
    %397 = vmatprep.subr.mxu0 0.0
    %398 = vmatpush1.msra.mxu0 0.0
    %399 = vmatprep.subr.mxu0 0.0
    %400 = vmatpush1.msra.mxu0 0.0
    %401 = vmatprep.subr.mxu0 0.0
    %402 = vmatpush1.msra.mxu0 0.0
    %403 = vmatprep.subr.mxu0 0.0
    %404 = vmatpush1.msra.mxu0 0.0
    %405 = vmatprep.subr.mxu0 0.0
    %406 = vmatpush1.msra.mxu0 0.0
    %407 = vmatprep.subr.mxu0 0.0
    %408 = vmatpush1.msra.mxu0 0.0
    %409 = vmatprep.subr.mxu0 0.0
    %410 = vmatpush1.msra.mxu0 0.0
    %411 = vmatprep.subr.mxu0 0.0
    %412 = vmatpush1.msra.mxu0 0.0
    %413 = vmatprep.subr.mxu0 0.0
    %414 = vmatpush1.msra.mxu0 0.0
    %415 = vmatprep.subr.mxu0 0.0
    %416 = vmatpush1.msra.mxu0 0.0
    %417 = vmatprep.mubr.f32.mxu0 0.0
    %418 = vmatmul.mubr.f32.gmra.mrb[0].mxu0 %v348
    %v419 = vpop.f32.mrb[0].mxu0
    %v420 = vadd.f32 0.0, %v419
    %v421 = vpop.f32.mrb[0].mxu0
    %422 = vmatprep.mubr.f32.mxu0 0.0
    %423 = vmatmul.mubr.f32.gmra.mrb[0].mxu0 %v351
    %v424 = vpop.f32.mrb[0].mxu0
    %v425 = vadd.f32 0.0, %v424
    %v426 = vpop.f32.mrb[0].mxu0
    %427 = vdwg.mxu0
    %v428 = vlaneseq
    %v429 = vshrl.u32 %v428, 7
    %v430 = vsub.s32 2, %v429
    %v431 = vrot.slane %v73, %v430
    %v432 = vmul.f32 %v431, %v420
    %v433 = vmul.f32 %v431, %v425
    %v434 = vadd.f32 %v342, %v432
    %v435 = vadd.f32 %v343, %v433
    %s436 = scalar_lea.vmem [#allocation7], 48
    %v437 = vld [vmem:[%s436] sm:$0xff]
    %v438 = vld [vmem:[%s436 + $0x8] sm:$0xf]
    %v440 = vsel %vm78, %v437, 0
    %v443 = vsel %vm78, %v438, 0
    %445 = vmatprep.subr.mxu0 0.0
    %446 = vmatpush1.msra.mxu0 %v71
    %447 = vmatprep.subr.mxu0 0.0
    %448 = vmatpush1.msra.mxu0 %v72
    %449 = vmatprep.subr.mxu0 0.0
    %450 = vmatpush1.msra.mxu0 0.0
    %451 = vmatprep.subr.mxu0 0.0
    %452 = vmatpush1.msra.mxu0 0.0
    %453 = vmatprep.subr.mxu0 0.0
    %454 = vmatpush1.msra.mxu0 0.0
    %455 = vmatprep.subr.mxu0 0.0
    %456 = vmatpush1.msra.mxu0 0.0
    %457 = vmatprep.subr.mxu0 0.0
    %458 = vmatpush1.msra.mxu0 0.0
    %459 = vmatprep.subr.mxu0 0.0
    %460 = vmatpush1.msra.mxu0 0.0
    %461 = vmatprep.subr.mxu0 0.0
    %462 = vmatpush1.msra.mxu0 0.0
    %463 = vmatprep.subr.mxu0 0.0
    %464 = vmatpush1.msra.mxu0 0.0
    %465 = vmatprep.subr.mxu0 0.0
    %466 = vmatpush1.msra.mxu0 0.0
    %467 = vmatprep.subr.mxu0 0.0
    %468 = vmatpush1.msra.mxu0 0.0
    %469 = vmatprep.subr.mxu0 0.0
    %470 = vmatpush1.msra.mxu0 0.0
    %471 = vmatprep.subr.mxu0 0.0
    %472 = vmatpush1.msra.mxu0 0.0
    %473 = vmatprep.subr.mxu0 0.0
    %474 = vmatpush1.msra.mxu0 0.0
    %475 = vmatprep.subr.mxu0 0.0
    %476 = vmatpush1.msra.mxu0 0.0
    %477 = vmatprep.subr.mxu0 0.0
    %478 = vmatpush1.msra.mxu0 0.0
    %479 = vmatprep.subr.mxu0 0.0
    %480 = vmatpush1.msra.mxu0 0.0
    %481 = vmatprep.subr.mxu0 0.0
    %482 = vmatpush1.msra.mxu0 0.0
    %483 = vmatprep.subr.mxu0 0.0
    %484 = vmatpush1.msra.mxu0 0.0
    %485 = vmatprep.subr.mxu0 0.0
    %486 = vmatpush1.msra.mxu0 0.0
    %487 = vmatprep.subr.mxu0 0.0
    %488 = vmatpush1.msra.mxu0 0.0
    %489 = vmatprep.subr.mxu0 0.0
    %490 = vmatpush1.msra.mxu0 0.0
    %491 = vmatprep.subr.mxu0 0.0
    %492 = vmatpush1.msra.mxu0 0.0
    %493 = vmatprep.subr.mxu0 0.0
    %494 = vmatpush1.msra.mxu0 0.0
    %495 = vmatprep.subr.mxu0 0.0
    %496 = vmatpush1.msra.mxu0 0.0
    %497 = vmatprep.subr.mxu0 0.0
    %498 = vmatpush1.msra.mxu0 0.0
    %499 = vmatprep.subr.mxu0 0.0
    %500 = vmatpush1.msra.mxu0 0.0
    %501 = vmatprep.subr.mxu0 0.0
    %502 = vmatpush1.msra.mxu0 0.0
    %503 = vmatprep.subr.mxu0 0.0
    %504 = vmatpush1.msra.mxu0 0.0
    %505 = vmatprep.subr.mxu0 0.0
    %506 = vmatpush1.msra.mxu0 0.0
    %507 = vmatprep.subr.mxu0 0.0
    %508 = vmatpush1.msra.mxu0 0.0
    %509 = vmatprep.mubr.f32.mxu0 0.0
    %510 = vmatmul.mubr.f32.gmra.mrb[0].mxu0 %v440
    %v511 = vpop.f32.mrb[0].mxu0
    %v512 = vadd.f32 0.0, %v511
    %v513 = vpop.f32.mrb[0].mxu0
    %514 = vmatprep.mubr.f32.mxu0 0.0
    %515 = vmatmul.mubr.f32.gmra.mrb[0].mxu0 %v443
    %v516 = vpop.f32.mrb[0].mxu0
    %v517 = vadd.f32 0.0, %v516
    %v518 = vpop.f32.mrb[0].mxu0
    %519 = vdwg.mxu0
    %v520 = vlaneseq
    %v521 = vshrl.u32 %v520, 7
    %v522 = vsub.s32 3, %v521
    %v523 = vrot.slane %v73, %v522
    %v524 = vmul.f32 %v523, %v512
    %v525 = vmul.f32 %v523, %v517
    %v526 = vadd.f32 %v434, %v524
    %v527 = vadd.f32 %v435, %v525
    %s528 = scalar_lea.vmem [#allocation7], 64
    %v529 = vld [vmem:[%s528] sm:$0xff]
    %v530 = vld [vmem:[%s528 + $0x8] sm:$0xf]
    %v532 = vsel %vm78, %v529, 0
    %v535 = vsel %vm78, %v530, 0
    %537 = vmatprep.subr.mxu0 0.0
    %538 = vmatpush1.msra.mxu0 %v71
    %539 = vmatprep.subr.mxu0 0.0
    %540 = vmatpush1.msra.mxu0 %v72
    %541 = vmatprep.subr.mxu0 0.0
    %542 = vmatpush1.msra.mxu0 0.0
    %543 = vmatprep.subr.mxu0 0.0
    %544 = vmatpush1.msra.mxu0 0.0
    %545 = vmatprep.subr.mxu0 0.0
    %546 = vmatpush1.msra.mxu0 0.0
    %547 = vmatprep.subr.mxu0 0.0
    %548 = vmatpush1.msra.mxu0 0.0
    %549 = vmatprep.subr.mxu0 0.0
    %550 = vmatpush1.msra.mxu0 0.0
    %551 = vmatprep.subr.mxu0 0.0
    %552 = vmatpush1.msra.mxu0 0.0
    %553 = vmatprep.subr.mxu0 0.0
    %554 = vmatpush1.msra.mxu0 0.0
    %555 = vmatprep.subr.mxu0 0.0
    %556 = vmatpush1.msra.mxu0 0.0
    %557 = vmatprep.subr.mxu0 0.0
    %558 = vmatpush1.msra.mxu0 0.0
    %559 = vmatprep.subr.mxu0 0.0
    %560 = vmatpush1.msra.mxu0 0.0
    %561 = vmatprep.subr.mxu0 0.0
    %562 = vmatpush1.msra.mxu0 0.0
    %563 = vmatprep.subr.mxu0 0.0
    %564 = vmatpush1.msra.mxu0 0.0
    %565 = vmatprep.subr.mxu0 0.0
    %566 = vmatpush1.msra.mxu0 0.0
    %567 = vmatprep.subr.mxu0 0.0
    %568 = vmatpush1.msra.mxu0 0.0
    %569 = vmatprep.subr.mxu0 0.0
    %570 = vmatpush1.msra.mxu0 0.0
    %571 = vmatprep.subr.mxu0 0.0
    %572 = vmatpush1.msra.mxu0 0.0
    %573 = vmatprep.subr.mxu0 0.0
    %574 = vmatpush1.msra.mxu0 0.0
    %575 = vmatprep.subr.mxu0 0.0
    %576 = vmatpush1.msra.mxu0 0.0
    %577 = vmatprep.subr.mxu0 0.0
    %578 = vmatpush1.msra.mxu0 0.0
    %579 = vmatprep.subr.mxu0 0.0
    %580 = vmatpush1.msra.mxu0 0.0
    %581 = vmatprep.subr.mxu0 0.0
    %582 = vmatpush1.msra.mxu0 0.0
    %583 = vmatprep.subr.mxu0 0.0
    %584 = vmatpush1.msra.mxu0 0.0
    %585 = vmatprep.subr.mxu0 0.0
    %586 = vmatpush1.msra.mxu0 0.0
    %587 = vmatprep.subr.mxu0 0.0
    %588 = vmatpush1.msra.mxu0 0.0
    %589 = vmatprep.subr.mxu0 0.0
    %590 = vmatpush1.msra.mxu0 0.0
    %591 = vmatprep.subr.mxu0 0.0
    %592 = vmatpush1.msra.mxu0 0.0
    %593 = vmatprep.subr.mxu0 0.0
    %594 = vmatpush1.msra.mxu0 0.0
    %595 = vmatprep.subr.mxu0 0.0
    %596 = vmatpush1.msra.mxu0 0.0
    %597 = vmatprep.subr.mxu0 0.0
    %598 = vmatpush1.msra.mxu0 0.0
    %599 = vmatprep.subr.mxu0 0.0
    %600 = vmatpush1.msra.mxu0 0.0
    %601 = vmatprep.mubr.f32.mxu0 0.0
    %602 = vmatmul.mubr.f32.gmra.mrb[0].mxu0 %v532
    %v603 = vpop.f32.mrb[0].mxu0
    %v604 = vadd.f32 0.0, %v603
    %v605 = vpop.f32.mrb[0].mxu0
    %606 = vmatprep.mubr.f32.mxu0 0.0
    %607 = vmatmul.mubr.f32.gmra.mrb[0].mxu0 %v535
    %v608 = vpop.f32.mrb[0].mxu0
    %v609 = vadd.f32 0.0, %v608
    %v610 = vpop.f32.mrb[0].mxu0
    %611 = vdwg.mxu0
    %v612 = vlaneseq
    %v613 = vshrl.u32 %v612, 7
    %v614 = vsub.s32 4, %v613
    %v615 = vrot.slane %v73, %v614
    %v616 = vmul.f32 %v615, %v604
    %v617 = vmul.f32 %v615, %v609
    %v618 = vadd.f32 %v526, %v616
    %v619 = vadd.f32 %v527, %v617
    %s620 = scalar_lea.vmem [#allocation7], 80
    %v621 = vld [vmem:[%s620] sm:$0xff]
    %v622 = vld [vmem:[%s620 + $0x8] sm:$0xf]
    %v624 = vsel %vm78, %v621, 0
    %v627 = vsel %vm78, %v622, 0
    %629 = vmatprep.subr.mxu0 0.0
    %630 = vmatpush1.msra.mxu0 %v71
    %631 = vmatprep.subr.mxu0 0.0
    %632 = vmatpush1.msra.mxu0 %v72
    %633 = vmatprep.subr.mxu0 0.0
    %634 = vmatpush1.msra.mxu0 0.0
    %635 = vmatprep.subr.mxu0 0.0
    %636 = vmatpush1.msra.mxu0 0.0
    %637 = vmatprep.subr.mxu0 0.0
    %638 = vmatpush1.msra.mxu0 0.0
    %639 = vmatprep.subr.mxu0 0.0
    %640 = vmatpush1.msra.mxu0 0.0
    %641 = vmatprep.subr.mxu0 0.0
    %642 = vmatpush1.msra.mxu0 0.0
    %643 = vmatprep.subr.mxu0 0.0
    %644 = vmatpush1.msra.mxu0 0.0
    %645 = vmatprep.subr.mxu0 0.0
    %646 = vmatpush1.msra.mxu0 0.0
    %647 = vmatprep.subr.mxu0 0.0
    %648 = vmatpush1.msra.mxu0 0.0
    %649 = vmatprep.subr.mxu0 0.0
    %650 = vmatpush1.msra.mxu0 0.0
    %651 = vmatprep.subr.mxu0 0.0
    %652 = vmatpush1.msra.mxu0 0.0
    %653 = vmatprep.subr.mxu0 0.0
    %654 = vmatpush1.msra.mxu0 0.0
    %655 = vmatprep.subr.mxu0 0.0
    %656 = vmatpush1.msra.mxu0 0.0
    %657 = vmatprep.subr.mxu0 0.0
    %658 = vmatpush1.msra.mxu0 0.0
    %659 = vmatprep.subr.mxu0 0.0
    %660 = vmatpush1.msra.mxu0 0.0
    %661 = vmatprep.subr.mxu0 0.0
    %662 = vmatpush1.msra.mxu0 0.0
    %663 = vmatprep.subr.mxu0 0.0
    %664 = vmatpush1.msra.mxu0 0.0
    %665 = vmatprep.subr.mxu0 0.0
    %666 = vmatpush1.msra.mxu0 0.0
    %667 = vmatprep.subr.mxu0 0.0
    %668 = vmatpush1.msra.mxu0 0.0
    %669 = vmatprep.subr.mxu0 0.0
    %670 = vmatpush1.msra.mxu0 0.0
    %671 = vmatprep.subr.mxu0 0.0
    %672 = vmatpush1.msra.mxu0 0.0
    %673 = vmatprep.subr.mxu0 0.0
    %674 = vmatpush1.msra.mxu0 0.0
    %675 = vmatprep.subr.mxu0 0.0
    %676 = vmatpush1.msra.mxu0 0.0
    %677 = vmatprep.subr.mxu0 0.0
    %678 = vmatpush1.msra.mxu0 0.0
    %679 = vmatprep.subr.mxu0 0.0
    %680 = vmatpush1.msra.mxu0 0.0
    %681 = vmatprep.subr.mxu0 0.0
    %682 = vmatpush1.msra.mxu0 0.0
    %683 = vmatprep.subr.mxu0 0.0
    %684 = vmatpush1.msra.mxu0 0.0
    %685 = vmatprep.subr.mxu0 0.0
    %686 = vmatpush1.msra.mxu0 0.0
    %687 = vmatprep.subr.mxu0 0.0
    %688 = vmatpush1.msra.mxu0 0.0
    %689 = vmatprep.subr.mxu0 0.0
    %690 = vmatpush1.msra.mxu0 0.0
    %691 = vmatprep.subr.mxu0 0.0
    %692 = vmatpush1.msra.mxu0 0.0
    %693 = vmatprep.mubr.f32.mxu0 0.0
    %694 = vmatmul.mubr.f32.gmra.mrb[0].mxu0 %v624
    %v695 = vpop.f32.mrb[0].mxu0
    %v696 = vadd.f32 0.0, %v695
    %v697 = vpop.f32.mrb[0].mxu0
    %698 = vmatprep.mubr.f32.mxu0 0.0
    %699 = vmatmul.mubr.f32.gmra.mrb[0].mxu0 %v627
    %v700 = vpop.f32.mrb[0].mxu0
    %v701 = vadd.f32 0.0, %v700
    %v702 = vpop.f32.mrb[0].mxu0
    %703 = vdwg.mxu0
    %v704 = vlaneseq
    %v705 = vshrl.u32 %v704, 7
    %v706 = vsub.s32 5, %v705
    %v707 = vrot.slane %v73, %v706
    %v708 = vmul.f32 %v707, %v696
    %v709 = vmul.f32 %v707, %v701
    %v710 = vadd.f32 %v618, %v708
    %v711 = vadd.f32 %v619, %v709
    %vm712 = vcmask 523264
    %713 = vst.msk [vmem:[#allocation10] sm:$0xff] %vm712, %v710
    %vm714 = vcmask 519168
    %715 = vst.msk [vmem:[#allocation10 + $0x8] sm:$0xf] %vm714, %v711
    // Predicated region
    $region34: #{sparse_rmok_forward.1} parent=1 // pred_check
      _
    $region35: #{sparse_rmok_forward.1} parent=1 // pred_check_branch
      %717 = sbr.rel (0) target = $region37
    $region36: #{sparse_rmok_forward.1} parent=1 // pred_region
      %s719 = ssub.s32 256, 256
      %720 = vsyncadd [#allocation4], %s719
      %s721 = sshll.u32 [#allocation10], 4
      %s722 = int_to_ptr.vmem [resolvable:$true] %s721
      %727 = dma.vmem_to_hbm [thread:$0]  %s722, 256, %s4, [#allocation4], 128, 128, 8
    $region37: #{sparse_rmok_forward.1} parent=1 // pred_fallthru
      _
    // Predicated region
    $region38: #{sparse_rmok_forward.1} parent=1 // pred_check
      _
    $region39: #{sparse_rmok_forward.1} parent=1 // pred_check_branch
      %729 = sbr.rel (0) target = $region41
    $region40: #{sparse_rmok_forward.1} parent=1 // pred_region
      %730 = dma.done [#allocation4], 256
    $region41: #{sparse_rmok_forward.1} parent=1 // pred_fallthru
      _
    %731 = vsyncpa [#allocation3], 1
    %732 = vsyncpa [#allocation6], 1
    %733 = vsyncpa [#allocation9], 1
    %734 = vsyncpa [#allocation4], 1

</llo_original>
